<compile_context>
chip_gen: v6e
topology: v6e:2x2x1
jax: 0.10.0
libtpu: 0.0.40
codegen_flags: <defaults>
</compile_context>

<pallas_src>
import numpy as np
import jax
import jax.numpy as jnp
from jax.experimental import pallas as pl
from jax.experimental.pallas import tpu as pltpu

# ----------------------------------------------------------------------------
# Gridworld geometry (small synthetic WindyGridworldEnv stand-in).
# ----------------------------------------------------------------------------
H, W = 8, 16           # grid rows / cols
NUM_ACTIONS = 4        # the trailing `4` argument of generate_concept
NUM_MAPS = 3           # wind_h, wind_v, region_penalty
NUM_FEATURES = NUM_ACTIONS * NUM_MAPS   # 12

K_STATES = H * W       # 128  (conveniently lane-aligned)

_ROW_ALIGN = 16        # batch-tile row alignment (works for f32 and bf16)


def _round_up(n, m):
    return ((n + m - 1) // m) * m


def make_env_maps():
    """Deterministic wind / penalty maps (stand-in for WindyGridworldEnv)."""
    rows = jnp.arange(H, dtype=jnp.float32)[:, None]
    cols = jnp.arange(W, dtype=jnp.float32)[None, :]
    wind_map_horizontal = jnp.mod(cols, 3.0) * jnp.ones((H, 1), jnp.float32)
    wind_map_vertical = jnp.mod(rows, 2.0) * jnp.ones((1, W), jnp.float32)
    region_penalty_map = 0.5 * jnp.mod(rows + cols, 4.0)
    return wind_map_horizontal, wind_map_vertical, region_penalty_map


def build_concept_matrix(wind_h, wind_v, penalty, dtype=jnp.float32):
    """C[s, a*3 + m] = map_m[ clip(state s moved by action a) ]  -> (H*W, 12)."""
    maps = jnp.stack([wind_h, wind_v, penalty], axis=0)          # (3, H, W)
    rr, cc = jnp.meshgrid(jnp.arange(H), jnp.arange(W), indexing="ij")
    deltas = [(-1, 0), (1, 0), (0, -1), (0, 1)]                  # up,down,left,right
    cols = []
    for (dr, dc) in deltas:
        nr = jnp.clip(rr + dr, 0, H - 1)
        nc = jnp.clip(cc + dc, 0, W - 1)
        for m in range(NUM_MAPS):
            cols.append(maps[m][nr, nc].reshape(-1))             # (H*W,)
    C = jnp.stack(cols, axis=1)                                  # (128, 12)
    return C.astype(dtype)


# ----------------------------------------------------------------------------
# Pallas kernel:  (TM, 128) f32 @ (128, 12) f32 -> (TM, 12) f32
# ----------------------------------------------------------------------------
def concept_matmul_kernel(x_ref, c_ref, o_ref):
    # x is read straight from HBM in its native f32 (no wrapper-side cast
    # pass); the dot is tiny relative to the x DMA, so the kernel is purely
    # HBM-read bound and f32 MXU throughput is irrelevant.
    o_ref[...] = jnp.dot(x_ref[...], c_ref[...],
                         preferred_element_type=jnp.float32)


def human_concepts_forward(x, concept_matrix, *, tm_max=8192,
                           min_pallas_batch=1024):
    """x: (batch, H, W) float one-hot grids -> (batch, 12) float32 features."""
    batch = x.shape[0]
    x_flat = x.reshape(batch, K_STATES)          # contiguous reshape: free view

    # Small-batch fallback: the pallas_call fixed launch + pipeline prologue
    # (a few us) dominates when the whole problem is < ~1 MiB; XLA's fused dot
    # is at least as fast there.
    if batch < min_pallas_batch:
        return jnp.dot(x_flat, concept_matrix,
                       preferred_element_type=jnp.float32)

    # Batch-tile selection:
    #  * >= 2 tiles so v7x's two TensorCores both get work ("parallel"),
    #  * tiles as large as possible (up to tm_max) to amortize the ~0.35 us
    #    per-grid-step overhead against each tile's multi-MiB DMA,
    #  * rows a multiple of 16 (sublane alignment); ragged last tile is fine
    #    since every output row depends only on its own input row.
    if batch <= 2 * _ROW_ALIGN:
        tm = batch                               # full-extent block, always legal
    else:
        tm = min(tm_max, _round_up(pl.cdiv(batch, 2), _ROW_ALIGN))
        tm = min(tm, batch)
    grid = (pl.cdiv(batch, tm),)

    return pl.pallas_call(
        concept_matmul_kernel,
        out_shape=jax.ShapeDtypeStruct((batch, NUM_FEATURES), jnp.float32),
        grid_spec=pltpu.PrefetchScalarGridSpec(
            num_scalar_prefetch=0,
            grid=grid,
            in_specs=[
                # batch tile streams; double-buffered across the grid
                pl.BlockSpec((tm, K_STATES), lambda i: (i, 0)),
                # constant block index -> DMA'd once, VMEM-resident (~6 KiB f32)
                pl.BlockSpec((K_STATES, NUM_FEATURES), lambda i: (0, 0)),
            ],
            # (TM, 12): legal since 12 == full last dim; only 48 B/row writeback
            # instead of 512 B/row with 128-lane padding.
            out_specs=pl.BlockSpec((tm, NUM_FEATURES), lambda i: (i, 0)),
        ),
        compiler_params=pltpu.CompilerParams(
            # v7x: split batch tiles over the 2 TensorCores.
            dimension_semantics=("parallel",),
            # ~9 MiB used at tm=8192 f32; explicit limit gives headroom on
            # v5e (16 MiB default scoped) if tm_max is ever raised.
            vmem_limit_bytes=32 * 1024 * 1024,
        ),
    )(x_flat, concept_matrix)


# ----------------------------------------------------------------------------
if __name__ == "__main__":
    key = jax.random.PRNGKey(0)
    batch = 40   # small demo batch; tm_max=16 below forces a 3-tile ragged grid

    # Deterministic "module parameters" (the env maps) and concept matrix.
    wind_h, wind_v, penalty = make_env_maps()
    concept_matrix = build_concept_matrix(wind_h, wind_v, penalty)   # f32 (128, 12)

    # Deterministic example input: one-hot agent positions on the grid.
    kr, kc = jax.random.split(key)
    rows = jax.random.randint(kr, (batch,), 0, H)
    cols = jax.random.randint(kc, (batch,), 0, W)
    x = jnp.zeros((batch, H, W), jnp.float32)
    x = x.at[jnp.arange(batch), rows, cols].set(1.0)

    # min_pallas_batch=0 + tm_max=16 -> grid=(3,) with a ragged last tile:
    # exercises the batch-tiled Pallas path at a small demo size.  (Production
    # batches >= 1024 hit it with tm up to 8192 and >= 2 tiles so both v7x
    # TensorCores engage.)
    features = human_concepts_forward(x, concept_matrix,
                                      tm_max=16, min_pallas_batch=0)
    features = jax.block_until_ready(features)

    # Cross-check against a plain-JAX f32 reference of the same semantics.
    ref = x.reshape(batch, -1) @ concept_matrix                      # (B, 12)
    assert features.shape == (batch, NUM_FEATURES)
    assert np.allclose(np.asarray(features), np.asarray(ref), atol=1e-5)

    print("KERNEL_OK")
</pallas_src>

<mosaic_0001>
module attributes {stable_mosaic.version = 11 : i64} {
  func.func @concept_matmul_kernel(%arg0: i32, %arg1: memref<16x128xf32, #tpu.memory_space<vmem>>, %arg2: memref<128x12xf32, #tpu.memory_space<vmem>>, %arg3: memref<16x12xf32, #tpu.memory_space<vmem>>) attributes {dimension_semantics = [#tpu.dimension_semantics<parallel>], iteration_bounds = array<i64: 3>, scalar_prefetch = 0 : i64, scratch_operands = 0 : i64, tpu.core_type = #tpu.core_type<tc>, window_params = [{transform_indices = @transform_0, window_bounds = array<i64: 16, 128>}, {pipeline_mode = #tpu.pipeline_mode<synchronous>, transform_indices = @transform_1, window_bounds = array<i64: 128, 12>}, {transform_indices = @transform_2, window_bounds = array<i64: 16, 12>}]} {
    %c0 = arith.constant 0 : index
    %c0_0 = arith.constant 0 : index
    %0 = vector.load %arg1[%c0, %c0_0] : memref<16x128xf32, #tpu.memory_space<vmem>>, vector<16x128xf32>
    %c0_1 = arith.constant 0 : index
    %c0_2 = arith.constant 0 : index
    %1 = vector.load %arg2[%c0_1, %c0_2] : memref<128x12xf32, #tpu.memory_space<vmem>>, vector<128x12xf32>
    %cst = arith.constant dense<0.000000e+00> : vector<16x12xf32>
    %2 = tpu.matmul %0, %1, %cst {dimension_numbers = #tpu.dot_dimension_numbers<[1], [0], [0], [1], [0, 0, 1, 1], [], []>} : vector<16x128xf32>, vector<128x12xf32>, vector<16x12xf32> -> vector<16x12xf32>
    %c0_3 = arith.constant 0 : index
    %c0_4 = arith.constant 0 : index
    %3 = vector.load %arg3[%c0_3, %c0_4] : memref<16x12xf32, #tpu.memory_space<vmem>>, vector<16x12xf32>
    tpu.vector_store %arg3[%c0_3, %c0_4], %2 {strides = array<i32>} : memref<16x12xf32, #tpu.memory_space<vmem>>, vector<16x12xf32>,
    return
  }
  func.func @transform_0(%arg0: i32) -> (i32, i32) {
    %c0_i32 = arith.constant 0 : i32
    %c0_i32_0 = arith.constant 0 : i32
    return %arg0, %c0_i32 : i32, i32
  }
  func.func @transform_1(%arg0: i32) -> (i32, i32) {
    %c0_i32 = arith.constant 0 : i32
    %c0_i32_0 = arith.constant 0 : i32
    %c0_i32_1 = arith.constant 0 : i32
    return %c0_i32, %c0_i32_0 : i32, i32
  }
  func.func @transform_2(%arg0: i32) -> (i32, i32) {
    %c0_i32 = arith.constant 0 : i32
    %c0_i32_0 = arith.constant 0 : i32
    return %arg0, %c0_i32 : i32, i32
  }
}

</mosaic_0001>

<llo_original>
// kernel: tpu_custom_call.1
$region0: #{tpu_custom_call.1}
  #allocation0 [shape = 'u32[]', space=smem, size = 0x4, offset = 0x4, fixed_abs, tag = 'smem constant byte address 0x4 - core index']
  #allocation1 [shape = 'u32[144,128]{1,0:T(1,128)}', space=vmem, size = 0x12000, scoped, tag = 'internal scratch']
  %s0 = inlined_call_operand.vmem [shape: f32[40,128], index: 0, kind: input, shape index: {}]
  %s1 = inlined_call_operand.vmem [shape: f32[128,12], index: 1, kind: input, shape index: {}]
  %s2 = inlined_call_operand.vmem [shape: f32[40,12], index: 2, kind: output, shape index: {}]
  %s3 = sld [smem:[#allocation0]]
  $region89: #{tpu_custom_call.1} parent=0
    _
  %s5 = ssub.s32 1, %s3
  %s6 = scalar_select 0, %s5, %s3
  $region1: #{tpu_custom_call.1} parent=0
    #allocation2 [shape = 'u8[16384]{0}', space=vmem, size = 0x4000, scoped, tag = 'output window, operand 0']
    loop: start=0, step=1, limit=5
    $region2: #{tpu_custom_call.1} parent=1 // loop_pre_header
      _
    $region3: #{tpu_custom_call.1} parent=1 // loop_header
      %s8 = sphi 0, %s12
      %p9 = scmp.ge.s32.totalorder %s8, 5
      %s18 = sphi 0, %s20
      %s21 = sphi 0, %s18
      %s22 = sphi 0, %s21
      %s38 = sphi 0, %s22
      %s42 = sphi 0, %s42
      %s44 = sphi 0, %s42
      %s45 = sphi 0, %s44
      %s59 = sphi 0, %s45
      %s65 = sphi 0, %s67
      %s68 = sphi 0, %s65
      %s69 = sphi 0, %s68
      %s85 = sphi 0, %s69
    $region4: #{tpu_custom_call.1} parent=1 // loop_header_branch
      %11 = sbr.rel (%p9) target = $region8
    $region5: #{tpu_custom_call.1} parent=1 // loop_body
      %s13 = ssub.s32 %s8, 1
      %s14 = ssub.s32 %s8, 2
      %s15 = sadd.s32 %s8, 1
      %s16 = ssub.s32 %s8, %s15
      %p17 = scmp.eq.s32.totalorder %s16, 0
      %s19 = sadd.s32 %s18, 1
      %s20 = scalar_select %p17, %s18, %s19
      %p23 = pneg %p17
      %p24 = scmp.eq.s32.totalorder %s8, 2
      %p25 = por %p23, %p24
      %p26 = scmp.ne.s32.totalorder %s18, %s21
      %p27 = scmp.eq.s32.totalorder %s8, 0
      %p28 = por %p26, %p27
      %p29 = scmp.ne.s32.totalorder %s18, %s21
      %p30 = scmp.eq.s32.totalorder %s13, 2
      %p31 = por %p29, %p30
      %p32 = scmp.ne.s32.totalorder %s21, %s22
      %p33 = scmp.eq.s32.totalorder %s13, 0
      %p34 = por %p32, %p33
      %p35 = scmp.ne.s32.totalorder %s21, %s22
      %p36 = scmp.eq.s32.totalorder %s14, 2
      %p37 = por %p35, %p36
      %p39 = scmp.ne.s32.totalorder %s22, %s38
      %p40 = scmp.eq.s32.totalorder %s14, 0
      %p41 = por %p39, %p40
      %s43 = sadd.s32 %s42, 1
      %p46 = scmp.eq.s32.totalorder %s8, 2
      %p47 = scmp.ne.s32.totalorder %s42, %s44
      %p48 = scmp.eq.s32.totalorder %s8, 0
      %p49 = por %p47, %p48
      %p50 = scmp.ne.s32.totalorder %s42, %s44
      %p51 = scmp.eq.s32.totalorder %s13, 2
      %p52 = por %p50, %p51
      %p53 = scmp.ne.s32.totalorder %s44, %s45
      %p54 = scmp.eq.s32.totalorder %s13, 0
      %p55 = por %p53, %p54
      %p56 = scmp.ne.s32.totalorder %s44, %s45
      %p57 = scmp.eq.s32.totalorder %s14, 2
      %p58 = por %p56, %p57
      %p60 = scmp.ne.s32.totalorder %s45, %s59
      %p61 = scmp.eq.s32.totalorder %s14, 0
      %p62 = por %p60, %p61
      %s63 = ssub.s32 %s8, %s15
      %p64 = scmp.eq.s32.totalorder %s63, 0
      %s66 = sadd.s32 %s65, 1
      %s67 = scalar_select %p64, %s65, %s66
      %p70 = pneg %p64
      %p71 = scmp.eq.s32.totalorder %s8, 2
      %p72 = por %p70, %p71
      %p73 = scmp.ne.s32.totalorder %s65, %s68
      %p74 = scmp.eq.s32.totalorder %s8, 0
      %p75 = por %p73, %p74
      %p76 = scmp.ne.s32.totalorder %s65, %s68
      %p77 = scmp.eq.s32.totalorder %s13, 2
      %p78 = por %p76, %p77
      %p79 = scmp.ne.s32.totalorder %s68, %s69
      %p80 = scmp.eq.s32.totalorder %s13, 0
      %p81 = por %p79, %p80
      %p82 = scmp.ne.s32.totalorder %s68, %s69
      %p83 = scmp.eq.s32.totalorder %s14, 2
      %p84 = por %p82, %p83
      %p86 = scmp.ne.s32.totalorder %s69, %s85
      %p87 = scmp.eq.s32.totalorder %s14, 0
      %p88 = por %p86, %p87
      %p89 = scmp.le.s32.totalorder 1, %s8
      %p90 = scmp.lt.s32.totalorder %s8, 4
      %p91 = pnand %p89, %p90
      %p92 = pneg %p91
      // Predicated region
      $region9: #{tpu_custom_call.1} parent=5 // pred_check
        _
      $region10: #{tpu_custom_call.1} parent=5 // pred_check_branch
        %94 = sbr.rel (%p91) target = $region12
      $region11: #{tpu_custom_call.1} parent=5 // pred_region
        %s95 = ssub.s32 %s8, 1
        // Predicated region
        $region13: #{tpu_custom_call.1} parent=11 // pred_check
          %p96 = pneg %p55
        $region14: #{tpu_custom_call.1} parent=11 // pred_check_branch
          %98 = sbr.rel (%p96) target = $region16
        $region15: #{tpu_custom_call.1} parent=11 // pred_region
          _
        $region16: #{tpu_custom_call.1} parent=11 // pred_fallthru
          _
      $region12: #{tpu_custom_call.1} parent=5 // pred_fallthru
        _
      %p99 = scmp.lt.s32.totalorder %s8, 3
      // Predicated region
      $region17: #{tpu_custom_call.1} parent=5 // pred_check
        %p100 = pneg %p99
      $region18: #{tpu_custom_call.1} parent=5 // pred_check_branch
        %102 = sbr.rel (%p100) target = $region20
      $region19: #{tpu_custom_call.1} parent=5 // pred_region
        // Predicated region
        $region21: #{tpu_custom_call.1} parent=19 // pred_check
          %p103 = pneg %p28
        $region22: #{tpu_custom_call.1} parent=19 // pred_check_branch
          %105 = sbr.rel (%p103) target = $region24
        $region23: #{tpu_custom_call.1} parent=19 // pred_region
          %s106 = smul.u32 2, %s8
          %s107 = ssub.s32 5, %s106
          %p108 = scmp.lt.s32.totalorder %s107, 2
          %s109 = scalar_select %p108, %s107, 2
          %s110 = smul.u32 128, %s109
          %p111 = scmp.lt.s32.totalorder %s106, 4
          %s112 = scalar_select %p111, %s106, 4
          %s113 = smul.addr %s112, 8
          %s114 = scalar_lea.vmem %s0, %s113
          %s115 = smul.u32 2, %s8
          %s116 = ssub.s32 5, %s115
          %p117 = scmp.lt.s32.totalorder %s116, 2
          %s118 = scalar_select %p117, %s116, 2
          %s119 = smul.u32 128, %s118
        $region24: #{tpu_custom_call.1} parent=19 // pred_fallthru
          _
      $region20: #{tpu_custom_call.1} parent=5 // pred_fallthru
        _
      %p120 = scmp.le.s32.totalorder 1, %s8
      %p121 = scmp.lt.s32.totalorder %s8, 4
      %p122 = pnand %p120, %p121
      %p123 = pneg %p122
      // Predicated region
      $region25: #{tpu_custom_call.1} parent=5 // pred_check
        _
      $region26: #{tpu_custom_call.1} parent=5 // pred_check_branch
        %125 = sbr.rel (%p122) target = $region28
      $region27: #{tpu_custom_call.1} parent=5 // pred_region
        %s126 = ssub.s32 %s8, 1
        %s127 = smul.u32 2, %s13
        %s128 = ssub.s32 5, %s127
        %p129 = scmp.lt.s32.totalorder %s128, 2
        %s130 = scalar_select %p129, %s128, 2
        %s131 = smul.u32 128, %s130
        %p132 = scmp.lt.s32.totalorder %s127, 4
        %s133 = scalar_select %p132, %s127, 4
        %s134 = smul.addr %s133, 8
        %s135 = scalar_lea.vmem %s0, %s134
        %p136 = pneg %p34
        %p137 = pneg %p31
        %p138 = pneg %p55
        %p139 = pneg %p52
        %p140 = pneg %p81
        %p141 = pneg %p78
        %s142 = sand.u32 %s68, 1
        %s143 = sand.u32 %s68, 1
        %s144 = smul.addr %s143, 16
        %s145 = scalar_lea.vmem [#allocation2], %s144
        %s146 = smul.u32 2, %s13
        %s147 = ssub.s32 5, %s146
        %p148 = scmp.lt.s32.totalorder %s147, 2
        %s149 = scalar_select %p148, %s147, 2
        %s150 = smul.u32 128, %s149
        %p151 = scmp.lt.s32.totalorder %s146, 4
        %s152 = scalar_select %p151, %s146, 4
        %s153 = smul.addr %s152, 8
        %s154 = scalar_lea.vmem %s0, %s153
        %s155 = smul.u32 2, %s13
        %s156 = ssub.s32 5, %s155
        %p157 = scmp.lt.s32.totalorder %s156, 2
        %s158 = scalar_select %p157, %s156, 2
        %s159 = smul.u32 128, %s158
        %s160 = smul.u32 2, %s13
        %s161 = ssub.s32 5, %s160
        %p162 = scmp.lt.s32.totalorder %s161, 2
        %s163 = scalar_select %p162, %s161, 2
        %s164 = smul.u32 128, %s163
        %v165 = vld [vmem:[%s154] sm:$0xff]
        %v166 = vld [vmem:[%s154 + $0x8] sm:$0xff]
        %v167 = vld [vmem:[%s1] sm:$0xff]
        %v168 = vld [vmem:[%s1 + $0x8] sm:$0xff]
        %v169 = vld [vmem:[%s1 + $0x10] sm:$0xff]
        %v170 = vld [vmem:[%s1 + $0x18] sm:$0xff]
        %v171 = vld [vmem:[%s1 + $0x20] sm:$0xff]
        %v172 = vld [vmem:[%s1 + $0x28] sm:$0xff]
        %v173 = vld [vmem:[%s1 + $0x30] sm:$0xff]
        %v174 = vld [vmem:[%s1 + $0x38] sm:$0xff]
        %v175 = vld [vmem:[%s1 + $0x40] sm:$0xff]
        %v176 = vld [vmem:[%s1 + $0x48] sm:$0xff]
        %v177 = vld [vmem:[%s1 + $0x50] sm:$0xff]
        %v178 = vld [vmem:[%s1 + $0x58] sm:$0xff]
        %v179 = vld [vmem:[%s1 + $0x60] sm:$0xff]
        %v180 = vld [vmem:[%s1 + $0x68] sm:$0xff]
        %v181 = vld [vmem:[%s1 + $0x70] sm:$0xff]
        %v182 = vld [vmem:[%s1 + $0x78] sm:$0xff]
        %183 = vmatprep.subr.mxu0 0.0
        %184 = vmatpush1.msra.mxu0 %v182
        %185 = vmatprep.subr.mxu0 0.0
        %186 = vmatpush1.msra.mxu0 %v181
        %187 = vmatprep.subr.mxu0 0.0
        %188 = vmatpush1.msra.mxu0 %v180
        %189 = vmatprep.subr.mxu0 0.0
        %190 = vmatpush1.msra.mxu0 %v179
        %191 = vmatprep.subr.mxu0 0.0
        %192 = vmatpush1.msra.mxu0 %v178
        %193 = vmatprep.subr.mxu0 0.0
        %194 = vmatpush1.msra.mxu0 %v177
        %195 = vmatprep.subr.mxu0 0.0
        %196 = vmatpush1.msra.mxu0 %v176
        %197 = vmatprep.subr.mxu0 0.0
        %198 = vmatpush1.msra.mxu0 %v175
        %199 = vmatprep.subr.mxu0 0.0
        %200 = vmatpush1.msra.mxu0 %v174
        %201 = vmatprep.subr.mxu0 0.0
        %202 = vmatpush1.msra.mxu0 %v173
        %203 = vmatprep.subr.mxu0 0.0
        %204 = vmatpush1.msra.mxu0 %v172
        %205 = vmatprep.subr.mxu0 0.0
        %206 = vmatpush1.msra.mxu0 %v171
        %207 = vmatprep.subr.mxu0 0.0
        %208 = vmatpush1.msra.mxu0 %v170
        %209 = vmatprep.subr.mxu0 0.0
        %210 = vmatpush1.msra.mxu0 %v169
        %211 = vmatprep.subr.mxu0 0.0
        %212 = vmatpush1.msra.mxu0 %v168
        %213 = vmatprep.subr.mxu0 0.0
        %214 = vmatpush1.msra.mxu0 %v167
        %215 = vmatprep.subr.mxu0 0.0
        %216 = vmatpush2.msra.mxu0 0.0
        %217 = vmatprep.subr.mxu0 0.0
        %218 = vmatpush2.msra.mxu0 0.0
        %219 = vmatprep.subr.mxu0 0.0
        %220 = vmatpush2.msra.mxu0 0.0
        %221 = vmatprep.subr.mxu0 0.0
        %222 = vmatpush2.msra.mxu0 0.0
        %223 = vmatprep.subr.mxu0 0.0
        %224 = vmatpush2.msra.mxu0 0.0
        %225 = vmatprep.subr.mxu0 0.0
        %226 = vmatpush2.msra.mxu0 0.0
        %227 = vmatprep.subr.mxu0 0.0
        %228 = vmatpush2.msra.mxu0 0.0
        %229 = vmatprep.subr.mxu0 0.0
        %230 = vmatpush2.msra.mxu0 0.0
        %231 = vmatprep.subr.mxu0 0.0
        %232 = vmatpush2.msra.mxu0 0.0
        %233 = vmatprep.subr.mxu0 0.0
        %234 = vmatpush2.msra.mxu0 0.0
        %235 = vmatprep.subr.mxu0 0.0
        %236 = vmatpush2.msra.mxu0 0.0
        %237 = vmatprep.subr.mxu0 0.0
        %238 = vmatpush2.msra.mxu0 0.0
        %239 = vmatprep.subr.mxu0 0.0
        %240 = vmatpush2.msra.mxu0 0.0
        %241 = vmatprep.subr.mxu0 0.0
        %242 = vmatpush2.msra.mxu0 0.0
        %243 = vmatprep.subr.mxu0 0.0
        %244 = vmatpush2.msra.mxu0 0.0
        %245 = vmatprep.subr.mxu0 0.0
        %246 = vmatpush2.msra.mxu0 0.0
        %247 = vmatprep.mubr.f32.mxu0 0.0
        %248 = vmatmul.mubr.f32.gmra.mxu0 %v165
        %v249 = vpop.f32.mrf.mxu0
        %v250 = vadd.f32 0.0, %v249
        %v251 = vpop.f32.mrf.mxu0
        %252 = vmatprep.mubr.f32.mxu0 0.0
        %253 = vmatmul.mubr.f32.gmra.mxu0 %v166
        %v254 = vpop.f32.mrf.mxu0
        %v255 = vadd.f32 0.0, %v254
        %v256 = vpop.f32.mrf.mxu0
        %257 = vdwg.mxu0
        %vm258 = vcmask 97280
        %259 = vst.msk [vmem:[%s145] sm:$0xff] %vm258, %v250
        %260 = vst.msk [vmem:[%s145 + $0x8] sm:$0xff] %vm258, %v255
        %s261 = sand.u32 %s68, 1
        %s262 = sand.u32 %s68, 1
        %s263 = smul.addr %s262, 16
        %s264 = scalar_lea.vmem [#allocation2], %s263
        // Predicated region
        $region29: #{tpu_custom_call.1} parent=27 // pred_check
          %p265 = pneg %p78
        $region30: #{tpu_custom_call.1} parent=27 // pred_check_branch
          %267 = sbr.rel (%p265) target = $region32
        $region31: #{tpu_custom_call.1} parent=27 // pred_region
          %s268 = smul.u32 2, %s13
          %s269 = ssub.s32 5, %s268
          %p270 = scmp.lt.s32.totalorder %s269, 2
          %s271 = scalar_select %p270, %s269, 2
          %s272 = smul.u32 128, %s271
          %p273 = scmp.ne.s32.totalorder 0, %s272
          %s274 = smul.addr %s268, 8
          %s275 = scalar_lea.vmem %s2, %s274
          // Predicated region
          $region33: #{tpu_custom_call.1} parent=31 // pred_check
            %p276 = pneg %p273
          $region34: #{tpu_custom_call.1} parent=31 // pred_check_branch
            %278 = sbr.rel (%p276) target = $region36
          $region35: #{tpu_custom_call.1} parent=31 // pred_region
            // Predicated region
            $region37: #{tpu_custom_call.1} parent=35 // pred_check
              _
            $region38: #{tpu_custom_call.1} parent=35 // pred_check_branch
              %280 = sbr.rel (0) target = $region40
            $region39: #{tpu_custom_call.1} parent=35 // pred_region
              // Predicated region
              $region59: #{tpu_custom_call.1} parent=39 // pred_check
                _
              $region60: #{tpu_custom_call.1} parent=39 // pred_check_branch
                %332 = sbr.rel (0) target = $region62
              $region61: #{tpu_custom_call.1} parent=39 // pred_region
                %s333 = sshrl.u32 %s271, 1
                // While loop
                $region63: #{tpu_custom_call.1} parent=61 // loop_pre_header
                  _
                $region64: #{tpu_custom_call.1} parent=61 // loop_header
                  %s335 = sphi 0, %s337
                  %p336 = scmp.ge.s32.totalorder %s335, %s333
                  %s340 = sphi 0, %s349
                  %s341 = sphi %s264, %s352
                  %s342 = sphi %s275, %s353
                $region65: #{tpu_custom_call.1} parent=61 // loop_header_branch
                  %339 = sbr.rel (%p336) target = $region69
                $region66: #{tpu_custom_call.1} parent=61 // loop_body
                  %v343 = vld [vmem:[%s341] sm:$0xff]
                  %344 = vst [vmem:[%s342] sm:$0xff] %v343
                  %v345 = vld [vmem:[%s341 + $0x8] sm:$0xff]
                  %346 = vst [vmem:[%s342 + $0x8] sm:$0xff] %v345
                  %s347 = sadd.s32 1, %s340
                  %p348 = scmp.ge.s32.totalorder %s347, %s333
                  %s349 = scalar_select %p348, 0, %s347
                  %s350 = smul.u32 %s349, 16
                  %s351 = smul.u32 %s349, 16
                  %s352 = scalar_lea.vmem %s264, %s350 [#allocation2]
                  %s353 = scalar_lea.vmem %s275, %s351
                $region67: #{tpu_custom_call.1} parent=61 // loop_footer
                  %s337 = sadd.s32 %s335, 1
                $region68: #{tpu_custom_call.1} parent=61 // loop_footer_branch
                  %334 = sbr.rel target = $region64
                $region69: #{tpu_custom_call.1} parent=61 // loop_exit
                  _
                %s354 = sshrl.u32 %s271, 1
                %s355 = sand.u32 %s271, 1
                %s356 = smul.u32 %s354, 2
                %s357 = smul.u32 8, %s356
                %s358 = scalar_lea.vmem %s264, %s357 [#allocation2]
                %s359 = smul.u32 8, %s356
                %s360 = scalar_lea.vmem %s275, %s359
                // While loop
                $region70: #{tpu_custom_call.1} parent=61 // loop_pre_header
                  _
                $region71: #{tpu_custom_call.1} parent=61 // loop_header
                  %s362 = sphi 0, %s364
                  %p363 = scmp.ge.s32.totalorder %s362, %s355
                  %s367 = sphi 0, %s374
                  %s368 = sphi %s358, %s377
                  %s369 = sphi %s360, %s378
                $region72: #{tpu_custom_call.1} parent=61 // loop_header_branch
                  %366 = sbr.rel (%p363) target = $region76
                $region73: #{tpu_custom_call.1} parent=61 // loop_body
                  %v370 = vld [vmem:[%s368] sm:$0xff]
                  %371 = vst [vmem:[%s369] sm:$0xff] %v370
                  %s372 = sadd.s32 1, %s367
                  %p373 = scmp.ge.s32.totalorder %s372, %s355
                  %s374 = scalar_select %p373, 0, %s372
                  %s375 = smul.u32 %s374, 8
                  %s376 = smul.u32 %s374, 8
                  %s377 = scalar_lea.vmem %s358, %s375 [#allocation2]
                  %s378 = scalar_lea.vmem %s360, %s376
                $region74: #{tpu_custom_call.1} parent=61 // loop_footer
                  %s364 = sadd.s32 %s362, 1
                $region75: #{tpu_custom_call.1} parent=61 // loop_footer_branch
                  %361 = sbr.rel target = $region71
                $region76: #{tpu_custom_call.1} parent=61 // loop_exit
                  _
              $region62: #{tpu_custom_call.1} parent=39 // pred_fallthru
                _
              // Predicated region
              $region77: #{tpu_custom_call.1} parent=39 // pred_check
                _
              $region78: #{tpu_custom_call.1} parent=39 // pred_check_branch
                %380 = sbr.rel target = $region80
              $region79: #{tpu_custom_call.1} parent=39 // pred_region
                _
              $region80: #{tpu_custom_call.1} parent=39 // pred_fallthru
                _
            $region40: #{tpu_custom_call.1} parent=35 // pred_fallthru
              _
            // Predicated region
            $region41: #{tpu_custom_call.1} parent=35 // pred_check
              _
            $region42: #{tpu_custom_call.1} parent=35 // pred_check_branch
              %282 = sbr.rel target = $region44
            $region43: #{tpu_custom_call.1} parent=35 // pred_region
              %s284 = ssub.s32 256, 1
              %s285 = sshrl.u32 %s271, 1
              // While loop
              $region45: #{tpu_custom_call.1} parent=43 // loop_pre_header
                _
              $region46: #{tpu_custom_call.1} parent=43 // loop_header
                %s287 = sphi 0, %s289
                %p288 = scmp.ge.s32.totalorder %s287, %s285
                %s292 = sphi 0, %s301
                %s293 = sphi %s264, %s304
                %s294 = sphi %s275, %s305
              $region47: #{tpu_custom_call.1} parent=43 // loop_header_branch
                %291 = sbr.rel (%p288) target = $region51
              $region48: #{tpu_custom_call.1} parent=43 // loop_body
                %v295 = vld [vmem:[%s293] sm:%s284]
                %296 = vst [vmem:[%s294] sm:%s284] %v295
                %v297 = vld [vmem:[%s293 + $0x8] sm:%s284]
                %298 = vst [vmem:[%s294 + $0x8] sm:%s284] %v297
                %s299 = sadd.s32 1, %s292
                %p300 = scmp.ge.s32.totalorder %s299, %s285
                %s301 = scalar_select %p300, 0, %s299
                %s302 = smul.u32 %s301, 16
                %s303 = smul.u32 %s301, 16
                %s304 = scalar_lea.vmem %s264, %s302 [#allocation2]
                %s305 = scalar_lea.vmem %s275, %s303
              $region49: #{tpu_custom_call.1} parent=43 // loop_footer
                %s289 = sadd.s32 %s287, 1
              $region50: #{tpu_custom_call.1} parent=43 // loop_footer_branch
                %286 = sbr.rel target = $region46
              $region51: #{tpu_custom_call.1} parent=43 // loop_exit
                _
              %s306 = sshrl.u32 %s271, 1
              %s307 = sand.u32 %s271, 1
              %s308 = smul.u32 %s306, 2
              %s309 = smul.u32 8, %s308
              %s310 = scalar_lea.vmem %s264, %s309 [#allocation2]
              %s311 = smul.u32 8, %s308
              %s312 = scalar_lea.vmem %s275, %s311
              // While loop
              $region52: #{tpu_custom_call.1} parent=43 // loop_pre_header
                _
              $region53: #{tpu_custom_call.1} parent=43 // loop_header
                %s314 = sphi 0, %s316
                %p315 = scmp.ge.s32.totalorder %s314, %s307
                %s319 = sphi 0, %s326
                %s320 = sphi %s310, %s329
                %s321 = sphi %s312, %s330
              $region54: #{tpu_custom_call.1} parent=43 // loop_header_branch
                %318 = sbr.rel (%p315) target = $region58
              $region55: #{tpu_custom_call.1} parent=43 // loop_body
                %v322 = vld [vmem:[%s320] sm:%s284]
                %323 = vst [vmem:[%s321] sm:%s284] %v322
                %s324 = sadd.s32 1, %s319
                %p325 = scmp.ge.s32.totalorder %s324, %s307
                %s326 = scalar_select %p325, 0, %s324
                %s327 = smul.u32 %s326, 8
                %s328 = smul.u32 %s326, 8
                %s329 = scalar_lea.vmem %s310, %s327 [#allocation2]
                %s330 = scalar_lea.vmem %s312, %s328
              $region56: #{tpu_custom_call.1} parent=43 // loop_footer
                %s316 = sadd.s32 %s314, 1
              $region57: #{tpu_custom_call.1} parent=43 // loop_footer_branch
                %313 = sbr.rel target = $region53
              $region58: #{tpu_custom_call.1} parent=43 // loop_exit
                _
            $region44: #{tpu_custom_call.1} parent=35 // pred_fallthru
              _
          $region36: #{tpu_custom_call.1} parent=31 // pred_fallthru
            _
          %381 = vnop
        $region32: #{tpu_custom_call.1} parent=27 // pred_fallthru
          _
      $region28: #{tpu_custom_call.1} parent=5 // pred_fallthru
        _
      %p382 = scmp.le.s32.totalorder 2, %s8
      // Predicated region
      $region81: #{tpu_custom_call.1} parent=5 // pred_check
        %p383 = pneg %p382
      $region82: #{tpu_custom_call.1} parent=5 // pred_check_branch
        %385 = sbr.rel (%p383) target = $region84
      $region83: #{tpu_custom_call.1} parent=5 // pred_region
        %s386 = ssub.s32 %s8, 2
        // Predicated region
        $region85: #{tpu_custom_call.1} parent=83 // pred_check
          %p387 = pneg %p84
        $region86: #{tpu_custom_call.1} parent=83 // pred_check_branch
          %389 = sbr.rel (%p387) target = $region88
        $region87: #{tpu_custom_call.1} parent=83 // pred_region
          %s390 = sand.u32 %s69, 1
          %s391 = sand.u32 %s69, 1
          %s392 = smul.addr %s391, 16
          %s393 = scalar_lea.vmem [#allocation2], %s392
        $region88: #{tpu_custom_call.1} parent=83 // pred_fallthru
          _
      $region84: #{tpu_custom_call.1} parent=5 // pred_fallthru
        _
    $region6: #{tpu_custom_call.1} parent=1 // loop_footer
      %s12 = sadd.s32 1, %s8
    $region7: #{tpu_custom_call.1} parent=1 // loop_footer_branch
      %7 = sbr.rel target = $region3
    $region8: #{tpu_custom_call.1} parent=1 // loop_exit
      _

</llo_original>
